<compile_context>
chip_gen: v7x
topology: tpu7x:2x2x1
jax: 0.10.0
libtpu: 0.0.40
codegen_flags: <defaults>
</compile_context>

<pallas_src>
import functools

import jax
import jax.numpy as jnp
from jax.experimental import pallas as pl
from jax.experimental.pallas import tpu as pltpu


def _round_up(v, m):
    return ((v + m - 1) // m) * m


# ---------------------------------------------------------------- kernel body

def _sontag_act(x, alpha=100.0, approx_recip=True):
    # atan(x)/pi + 0.5 + cos(x) / (alpha * (1 + x^2))
    # The reciprocal goes to the EUP slot; 1/pi is a single multiply.
    inv = pl.reciprocal(alpha * (1.0 + x * x), approx=approx_recip)
    return jnp.arctan(x) * (1.0 / jnp.pi) + 0.5 + jnp.cos(x) * inv


def _mlp_kernel(xt_ref, w1_ref, b1_ref, w2_ref, b2_ref, w3_ref, b3_ref,
                w4_ref, b4_ref, o_ref, *, sontag, approx_recip):
    if sontag:
        act = functools.partial(_sontag_act, approx_recip=approx_recip)
    else:
        act = lambda v: jnp.maximum(v, 0.0)

    xt = xt_ref[...]                                              # (2, tb)  batch on lanes

    h = jnp.dot(w1_ref[...], xt, preferred_element_type=jnp.float32) + b1_ref[...]
    h = act(h)                                                    # (H1p, tb)
    h = jnp.dot(w2_ref[...], h, preferred_element_type=jnp.float32) + b2_ref[...]
    h = act(h)                                                    # (H2p, tb)
    h = jnp.dot(w3_ref[...], h, preferred_element_type=jnp.float32) + b3_ref[...]
    h = act(h)                                                    # (H3p, tb)
    z = jnp.dot(w4_ref[...], h, preferred_element_type=jnp.float32) + b4_ref[...]
    o_ref[...] = jax.nn.sigmoid(z).astype(o_ref.dtype)            # (1, tb) lane-dense store


# ---------------------------------------------------------------- wrapper

def _pad_weight(w, rows, cols):
    out = jnp.zeros((rows, cols), jnp.float32)
    return out.at[:w.shape[0], :w.shape[1]].set(w.astype(jnp.float32))


def _pad_bias(b, rows):
    out = jnp.zeros((rows, 1), jnp.float32)
    return out.at[:b.shape[0], 0].set(b.astype(jnp.float32))


def rede_neural3_forward(x, params, *, sontag=False, block_batch=4096,
                         approx_recip=True):
    """x: (N, 2) float32.
    params: PyTorch Linear layout -- w{i}: (out, in), b{i}: (out,)."""
    n, din = x.shape
    assert din == 2
    assert block_batch % 128 == 0, "block_batch must be a multiple of 128 (lane width)"

    # Clamp the batch tile to the padded batch so small inputs use a single
    # minimal tile; large inputs keep big tiles to amortize grid-step overhead.
    tb = min(block_batch, _round_up(n, 128))

    w1, b1 = params["w1"], params["b1"]
    w2, b2 = params["w2"], params["b2"]
    w3, b3 = params["w3"], params["b3"]
    w4, b4 = params["w4"], params["b4"]
    h1, h2, h3 = w1.shape[0], w2.shape[0], w3.shape[0]

    # Pad hidden dims to a sublane multiple. Zero-padded rows/cols cannot leak:
    # the following layer's weights for padded inputs are zero, so even
    # act(0) != 0 (Sontag) contributes nothing to live outputs.
    h1p, h2p, h3p = (_round_up(h, 8) for h in (h1, h2, h3))
    w1p, b1p = _pad_weight(w1, h1p, din), _pad_bias(b1, h1p)
    w2p, b2p = _pad_weight(w2, h2p, h1p), _pad_bias(b2, h2p)
    w3p, b3p = _pad_weight(w3, h3p, h2p), _pad_bias(b3, h3p)
    w4p, b4p = _pad_weight(w4, 1, h3p), _pad_bias(b4, 1)

    # Batch on the lane axis: transpose and pad batch to a tile multiple.
    n_pad = _round_up(n, tb)
    xt = jnp.zeros((din, n_pad), jnp.float32).at[:, :n].set(
        x.astype(jnp.float32).T)

    grid = (n_pad // tb,)

    def rep(shape):
        # Constant block index => parameters stay resident in VMEM across the grid.
        return pl.BlockSpec(shape, lambda i: (0, 0))

    kernel = functools.partial(_mlp_kernel, sontag=sontag,
                               approx_recip=approx_recip)

    # Advisory cost hint for XLA scheduling around the custom call.
    flops = (2 * n_pad * (din * h1p + h1p * h2p + h2p * h3p + h3p)
             + 8 * n_pad * (h1p + h2p + h3p))
    transcendentals = n_pad * ((3 * (h1p + h2p + h3p) + 1) if sontag else 1)
    weight_bytes = 4 * (w1p.size + b1p.size + w2p.size + b2p.size
                        + w3p.size + b3p.size + w4p.size + b4p.size)
    bytes_accessed = 4 * (din * n_pad + n_pad) + weight_bytes

    out_t = pl.pallas_call(
        kernel,
        out_shape=jax.ShapeDtypeStruct((1, n_pad), jnp.float32),
        grid=grid,
        in_specs=[
            pl.BlockSpec((din, tb), lambda i: (0, i)),   # x^T, batch-tiled on lanes
            rep(w1p.shape), rep(b1p.shape),
            rep(w2p.shape), rep(b2p.shape),
            rep(w3p.shape), rep(b3p.shape),
            rep(w4p.shape), rep(b4p.shape),
        ],
        out_specs=pl.BlockSpec((1, tb), lambda i: (0, i)),  # lane-dense output slab
        compiler_params=pltpu.CompilerParams(
            dimension_semantics=("parallel",)),
        cost_estimate=pl.CostEstimate(
            flops=flops, transcendentals=transcendentals,
            bytes_accessed=bytes_accessed),
    )(xt, w1p, b1p, w2p, b2p, w3p, b3p, w4p, b4p)

    return out_t[0, :n].reshape(n, 1)


# ---------------------------------------------------------------- init & reference

def init_params(key, h1=10, h2=10, h3=10):
    """PyTorch Linear-style init: U(-1/sqrt(fan_in), 1/sqrt(fan_in)),
    weight (out, in), bias (out,)."""
    dims = [(h1, 2), (h2, h1), (h3, h2), (1, h3)]
    params = {}
    for idx, (fan_out, fan_in) in enumerate(dims, start=1):
        key, kw, kb = jax.random.split(key, 3)
        bound = 1.0 / jnp.sqrt(jnp.float32(fan_in))
        params[f"w{idx}"] = jax.random.uniform(
            kw, (fan_out, fan_in), jnp.float32, -bound, bound)
        params[f"b{idx}"] = jax.random.uniform(
            kb, (fan_out,), jnp.float32, -bound, bound)
    return params


def _sontag_ref(x, alpha=100.0):
    return jnp.arctan(x) / jnp.pi + 0.5 + jnp.cos(x) / (alpha * (1.0 + x * x))


def _reference_forward(x, params, *, sontag=False):
    act = _sontag_ref if sontag else (lambda v: jnp.maximum(v, 0.0))
    h = act(x @ params["w1"].T + params["b1"])
    h = act(h @ params["w2"].T + params["b2"])
    h = act(h @ params["w3"].T + params["b3"])
    return jax.nn.sigmoid(h @ params["w4"].T + params["b4"])


# ---------------------------------------------------------------- demo / check

if __name__ == "__main__":
    key = jax.random.PRNGKey(0)
    kx, kp = jax.random.split(key)

    batch = 16
    x = jax.random.normal(kx, (batch, 2), jnp.float32)
    params = init_params(kp, h1=10, h2=10, h3=10)

    # ReLU variant (default RedeNeural3(sontag=False)); small batch -> single 128 tile.
    out = jax.block_until_ready(rede_neural3_forward(x, params, sontag=False))
    ref = _reference_forward(x, params, sontag=False)
    assert out.shape == (batch, 1)
    assert jnp.allclose(out, ref, atol=1e-5, rtol=1e-5)

    # Sontag-activation variant (approx EUP reciprocal -> slightly looser tol).
    out_s = jax.block_until_ready(rede_neural3_forward(x, params, sontag=True))
    ref_s = _reference_forward(x, params, sontag=True)
    assert jnp.allclose(out_s, ref_s, atol=1e-4, rtol=1e-4)

    # Exercise the multi-tile grid + batch-padding path.
    x2 = jax.random.normal(kx, (300, 2), jnp.float32)
    out2 = jax.block_until_ready(
        rede_neural3_forward(x2, params, sontag=False, block_batch=128))
    ref2 = _reference_forward(x2, params, sontag=False)
    assert out2.shape == (300, 1)
    assert jnp.allclose(out2, ref2, atol=1e-5, rtol=1e-5)

    print("KERNEL_OK")
</pallas_src>

<mosaic_0001>
module attributes {stable_mosaic.version = 11 : i64} {
  func.func @_mlp_kernel(%arg0: i32, %arg1: memref<2x128xf32, #tpu.memory_space<vmem>>, %arg2: memref<16x2xf32, #tpu.memory_space<vmem>>, %arg3: memref<16x1xf32, #tpu.memory_space<vmem>>, %arg4: memref<16x16xf32, #tpu.memory_space<vmem>>, %arg5: memref<16x1xf32, #tpu.memory_space<vmem>>, %arg6: memref<16x16xf32, #tpu.memory_space<vmem>>, %arg7: memref<16x1xf32, #tpu.memory_space<vmem>>, %arg8: memref<1x16xf32, #tpu.memory_space<vmem>>, %arg9: memref<1x1xf32, #tpu.memory_space<vmem>>, %arg10: memref<1x128xf32, #tpu.memory_space<vmem>>) attributes {dimension_semantics = [#tpu.dimension_semantics<parallel>], iteration_bounds = array<i64: 1>, scalar_prefetch = 0 : i64, scratch_operands = 0 : i64, tpu.core_type = #tpu.core_type<tc>, window_params = [{transform_indices = @transform_0, window_bounds = array<i64: 2, 128>}, {pipeline_mode = #tpu.pipeline_mode<synchronous>, transform_indices = @transform_1, window_bounds = array<i64: 16, 2>}, {pipeline_mode = #tpu.pipeline_mode<synchronous>, transform_indices = @transform_2, window_bounds = array<i64: 16, 1>}, {pipeline_mode = #tpu.pipeline_mode<synchronous>, transform_indices = @transform_3, window_bounds = array<i64: 16, 16>}, {pipeline_mode = #tpu.pipeline_mode<synchronous>, transform_indices = @transform_4, window_bounds = array<i64: 16, 1>}, {pipeline_mode = #tpu.pipeline_mode<synchronous>, transform_indices = @transform_5, window_bounds = array<i64: 16, 16>}, {pipeline_mode = #tpu.pipeline_mode<synchronous>, transform_indices = @transform_6, window_bounds = array<i64: 16, 1>}, {pipeline_mode = #tpu.pipeline_mode<synchronous>, transform_indices = @transform_7, window_bounds = array<i64: 1, 16>}, {pipeline_mode = #tpu.pipeline_mode<synchronous>, transform_indices = @transform_8, window_bounds = array<i64: 1, 1>}, {transform_indices = @transform_9, window_bounds = array<i64: 1, 128>}]} {
    %c0 = arith.constant 0 : index
    %c0_0 = arith.constant 0 : index
    %0 = vector.load %arg1[%c0, %c0_0] : memref<2x128xf32, #tpu.memory_space<vmem>>, vector<2x128xf32>
    %c0_1 = arith.constant 0 : index
    %c0_2 = arith.constant 0 : index
    %1 = vector.load %arg2[%c0_1, %c0_2] : memref<16x2xf32, #tpu.memory_space<vmem>>, vector<16x2xf32>
    %cst = arith.constant dense<0.000000e+00> : vector<16x128xf32>
    %2 = tpu.matmul %1, %0, %cst {dimension_numbers = #tpu.dot_dimension_numbers<[1], [0], [0], [1], [0, 0, 1, 1], [], []>} : vector<16x2xf32>, vector<2x128xf32>, vector<16x128xf32> -> vector<16x128xf32>
    %c0_3 = arith.constant 0 : index
    %c0_4 = arith.constant 0 : index
    %3 = vector.load %arg3[%c0_3, %c0_4] : memref<16x1xf32, #tpu.memory_space<vmem>>, vector<16x1xf32>
    %4 = vector.broadcast %3 : vector<16x1xf32> to vector<16x128xf32>
    %5 = arith.addf %2, %4 : vector<16x128xf32>
    %cst_5 = arith.constant 0.000000e+00 : f32
    %6 = vector.broadcast %cst_5 : f32 to vector<16x128xf32>
    %7 = arith.maximumf %5, %6 : vector<16x128xf32>
    %c0_6 = arith.constant 0 : index
    %c0_7 = arith.constant 0 : index
    %8 = vector.load %arg4[%c0_6, %c0_7] : memref<16x16xf32, #tpu.memory_space<vmem>>, vector<16x16xf32>
    %cst_8 = arith.constant dense<0.000000e+00> : vector<16x128xf32>
    %9 = tpu.matmul %8, %7, %cst_8 {dimension_numbers = #tpu.dot_dimension_numbers<[1], [0], [0], [1], [0, 0, 1, 1], [], []>} : vector<16x16xf32>, vector<16x128xf32>, vector<16x128xf32> -> vector<16x128xf32>
    %c0_9 = arith.constant 0 : index
    %c0_10 = arith.constant 0 : index
    %10 = vector.load %arg5[%c0_9, %c0_10] : memref<16x1xf32, #tpu.memory_space<vmem>>, vector<16x1xf32>
    %11 = vector.broadcast %10 : vector<16x1xf32> to vector<16x128xf32>
    %12 = arith.addf %9, %11 : vector<16x128xf32>
    %cst_11 = arith.constant 0.000000e+00 : f32
    %13 = vector.broadcast %cst_11 : f32 to vector<16x128xf32>
    %14 = arith.maximumf %12, %13 : vector<16x128xf32>
    %c0_12 = arith.constant 0 : index
    %c0_13 = arith.constant 0 : index
    %15 = vector.load %arg6[%c0_12, %c0_13] : memref<16x16xf32, #tpu.memory_space<vmem>>, vector<16x16xf32>
    %cst_14 = arith.constant dense<0.000000e+00> : vector<16x128xf32>
    %16 = tpu.matmul %15, %14, %cst_14 {dimension_numbers = #tpu.dot_dimension_numbers<[1], [0], [0], [1], [0, 0, 1, 1], [], []>} : vector<16x16xf32>, vector<16x128xf32>, vector<16x128xf32> -> vector<16x128xf32>
    %c0_15 = arith.constant 0 : index
    %c0_16 = arith.constant 0 : index
    %17 = vector.load %arg7[%c0_15, %c0_16] : memref<16x1xf32, #tpu.memory_space<vmem>>, vector<16x1xf32>
    %18 = vector.broadcast %17 : vector<16x1xf32> to vector<16x128xf32>
    %19 = arith.addf %16, %18 : vector<16x128xf32>
    %cst_17 = arith.constant 0.000000e+00 : f32
    %20 = vector.broadcast %cst_17 : f32 to vector<16x128xf32>
    %21 = arith.maximumf %19, %20 : vector<16x128xf32>
    %c0_18 = arith.constant 0 : index
    %c0_19 = arith.constant 0 : index
    %22 = vector.load %arg8[%c0_18, %c0_19] : memref<1x16xf32, #tpu.memory_space<vmem>>, vector<1x16xf32>
    %cst_20 = arith.constant dense<0.000000e+00> : vector<1x128xf32>
    %23 = tpu.matmul %22, %21, %cst_20 {dimension_numbers = #tpu.dot_dimension_numbers<[1], [0], [0], [1], [0, 0, 1, 1], [], []>} : vector<1x16xf32>, vector<16x128xf32>, vector<1x128xf32> -> vector<1x128xf32>
    %c0_21 = arith.constant 0 : index
    %c0_22 = arith.constant 0 : index
    %24 = vector.load %arg9[%c0_21, %c0_22] : memref<1x1xf32, #tpu.memory_space<vmem>>, vector<1x1xf32>
    %25 = vector.broadcast %24 : vector<1x1xf32> to vector<1x128xf32>
    %26 = arith.addf %23, %25 : vector<1x128xf32>
    %27 = arith.negf %26 : vector<1x128xf32>
    %28 = math.exp %27 : vector<1x128xf32>
    %cst_23 = arith.constant 1.000000e+00 : f32
    %29 = vector.broadcast %cst_23 : f32 to vector<1x128xf32>
    %30 = arith.addf %29, %28 : vector<1x128xf32>
    %31 = arith.divf %29, %30 : vector<1x128xf32>
    %c0_24 = arith.constant 0 : index
    %c0_25 = arith.constant 0 : index
    %32 = vector.load %arg10[%c0_24, %c0_25] : memref<1x128xf32, #tpu.memory_space<vmem>>, vector<1x128xf32>
    tpu.vector_store %arg10[%c0_24, %c0_25], %31 {strides = array<i32>} : memref<1x128xf32, #tpu.memory_space<vmem>>, vector<1x128xf32>,
    return
  }
  func.func @transform_0(%arg0: i32) -> (i32, i32) {
    %c0_i32 = arith.constant 0 : i32
    %c0_i32_0 = arith.constant 0 : i32
    return %c0_i32, %arg0 : i32, i32
  }
  func.func @transform_1(%arg0: i32) -> (i32, i32) {
    %c0_i32 = arith.constant 0 : i32
    %c0_i32_0 = arith.constant 0 : i32
    %c0_i32_1 = arith.constant 0 : i32
    return %c0_i32, %c0_i32_0 : i32, i32
  }
  func.func @transform_2(%arg0: i32) -> (i32, i32) {
    %c0_i32 = arith.constant 0 : i32
    %c0_i32_0 = arith.constant 0 : i32
    %c0_i32_1 = arith.constant 0 : i32
    return %c0_i32, %c0_i32_0 : i32, i32
  }
  func.func @transform_3(%arg0: i32) -> (i32, i32) {
    %c0_i32 = arith.constant 0 : i32
    %c0_i32_0 = arith.constant 0 : i32
    %c0_i32_1 = arith.constant 0 : i32
    return %c0_i32, %c0_i32_0 : i32, i32
  }
  func.func @transform_4(%arg0: i32) -> (i32, i32) {
    %c0_i32 = arith.constant 0 : i32
    %c0_i32_0 = arith.constant 0 : i32
    %c0_i32_1 = arith.constant 0 : i32
    return %c0_i32, %c0_i32_0 : i32, i32
  }
  func.func @transform_5(%arg0: i32) -> (i32, i32) {
    %c0_i32 = arith.constant 0 : i32
    %c0_i32_0 = arith.constant 0 : i32
    %c0_i32_1 = arith.constant 0 : i32
    return %c0_i32, %c0_i32_0 : i32, i32
  }
  func.func @transform_6(%arg0: i32) -> (i32, i32) {
    %c0_i32 = arith.constant 0 : i32
    %c0_i32_0 = arith.constant 0 : i32
    %c0_i32_1 = arith.constant 0 : i32
    return %c0_i32, %c0_i32_0 : i32, i32
  }
  func.func @transform_7(%arg0: i32) -> (i32, i32) {
    %c0_i32 = arith.constant 0 : i32
    %c0_i32_0 = arith.constant 0 : i32
    %c0_i32_1 = arith.constant 0 : i32
    return %c0_i32, %c0_i32_0 : i32, i32
  }
  func.func @transform_8(%arg0: i32) -> (i32, i32) {
    %c0_i32 = arith.constant 0 : i32
    %c0_i32_0 = arith.constant 0 : i32
    %c0_i32_1 = arith.constant 0 : i32
    return %c0_i32, %c0_i32_0 : i32, i32
  }
  func.func @transform_9(%arg0: i32) -> (i32, i32) {
    %c0_i32 = arith.constant 0 : i32
    %c0_i32_0 = arith.constant 0 : i32
    return %c0_i32, %arg0 : i32, i32
  }
}

</mosaic_0001>

<llo_original>
// kernel: tpu_custom_call.1
$region0: #{tpu_custom_call.1}
  #allocation0 [shape = 'u32[]', space=smem, size = 0x4, offset = 0x4, fixed_abs, tag = 'smem constant byte address 0x4 - core index']
  #allocation1 [shape = 'u32[144,128]{1,0:T(1,128)}', space=vmem, size = 0x12000, scoped, tag = 'internal scratch']
  #allocation2 [shape = 'f32[1,1]{1,0:T(1,128)S(1)}', space=vmem, size = 0x200, scoped, tag = 'scoped memory for tpu_custom_call.1']
  %s0 = inlined_call_operand.vmem [shape: f32[2,128], index: 0, kind: input, shape index: {}]
  %s1 = inlined_call_operand.vmem [shape: f32[16,2], index: 1, kind: input, shape index: {}]
  %s2 = inlined_call_operand.vmem [shape: f32[16,1], index: 2, kind: input, shape index: {}]
  %s3 = inlined_call_operand.vmem [shape: f32[16,16], index: 3, kind: input, shape index: {}]
  %s4 = inlined_call_operand.vmem [shape: f32[16,1], index: 4, kind: input, shape index: {}]
  %s5 = inlined_call_operand.vmem [shape: f32[16,16], index: 5, kind: input, shape index: {}]
  %s6 = inlined_call_operand.vmem [shape: f32[16,1], index: 6, kind: input, shape index: {}]
  %s7 = inlined_call_operand.vmem [shape: f32[1,16], index: 7, kind: input, shape index: {}]
  %s8 = inlined_call_operand.<no memory space> [shape: f32[1,1], index: 8, kind: input, shape index: {}]
  %s9 = inlined_call_operand.hbm [shape: f32[1,128], index: 9, kind: output, shape index: {}]
  %s10 = sld [smem:[#allocation0]]
  $region46: #{tpu_custom_call.1} parent=0
    _
  %s12 = ssub.s32 1, %s10
  %s13 = scalar_select 0, %s12, %s10
  %v14 = vstv %s8
  %15 = vst [vmem:[#allocation2] sm:$0x1] %v14
  $region1: #{tpu_custom_call.1} parent=0
    #allocation3 [shape = 'u8[512]{0}', space=vmem, size = 0x400, scoped, tag = 'output window, operand 0, single buffered']
    #allocation4 [shape = 's32[1]{0}', space=sflag, size = 0x4, scoped, tag = 'scoped memory for tpu_custom_call.1']
    %16 = vsyncpa [#allocation4], 0
    // Predicated region
    $region2: #{tpu_custom_call.1} parent=1 // pred_check
      _
    $region3: #{tpu_custom_call.1} parent=1 // pred_check_branch
      %18 = sbr.rel (0) target = $region5
    $region4: #{tpu_custom_call.1} parent=1 // pred_region
      _
    $region5: #{tpu_custom_call.1} parent=1 // pred_fallthru
      _
    // Predicated region
    $region6: #{tpu_custom_call.1} parent=1 // pred_check
      _
    $region7: #{tpu_custom_call.1} parent=1 // pred_check_branch
      %20 = sbr.rel (0) target = $region9
    $region8: #{tpu_custom_call.1} parent=1 // pred_region
      _
    $region9: #{tpu_custom_call.1} parent=1 // pred_fallthru
      _
    // Predicated region
    $region10: #{tpu_custom_call.1} parent=1 // pred_check
      _
    $region11: #{tpu_custom_call.1} parent=1 // pred_check_branch
      %22 = sbr.rel (0) target = $region13
    $region12: #{tpu_custom_call.1} parent=1 // pred_region
      _
    $region13: #{tpu_custom_call.1} parent=1 // pred_fallthru
      _
    // Predicated region
    $region14: #{tpu_custom_call.1} parent=1 // pred_check
      _
    $region15: #{tpu_custom_call.1} parent=1 // pred_check_branch
      %24 = sbr.rel (0) target = $region17
    $region16: #{tpu_custom_call.1} parent=1 // pred_region
      _
    $region17: #{tpu_custom_call.1} parent=1 // pred_fallthru
      _
    // Predicated region
    $region18: #{tpu_custom_call.1} parent=1 // pred_check
      _
    $region19: #{tpu_custom_call.1} parent=1 // pred_check_branch
      %26 = sbr.rel (0) target = $region21
    $region20: #{tpu_custom_call.1} parent=1 // pred_region
      _
    $region21: #{tpu_custom_call.1} parent=1 // pred_fallthru
      _
    // Predicated region
    $region22: #{tpu_custom_call.1} parent=1 // pred_check
      _
    $region23: #{tpu_custom_call.1} parent=1 // pred_check_branch
      %28 = sbr.rel (0) target = $region25
    $region24: #{tpu_custom_call.1} parent=1 // pred_region
      _
    $region25: #{tpu_custom_call.1} parent=1 // pred_fallthru
      _
    // Predicated region
    $region26: #{tpu_custom_call.1} parent=1 // pred_check
      _
    $region27: #{tpu_custom_call.1} parent=1 // pred_check_branch
      %30 = sbr.rel (0) target = $region29
    $region28: #{tpu_custom_call.1} parent=1 // pred_region
      _
    $region29: #{tpu_custom_call.1} parent=1 // pred_fallthru
      _
    // Predicated region
    $region30: #{tpu_custom_call.1} parent=1 // pred_check
      _
    $region31: #{tpu_custom_call.1} parent=1 // pred_check_branch
      %32 = sbr.rel (0) target = $region33
    $region32: #{tpu_custom_call.1} parent=1 // pred_region
      _
    $region33: #{tpu_custom_call.1} parent=1 // pred_fallthru
      _
    // Predicated region
    $region34: #{tpu_custom_call.1} parent=1 // pred_check
      _
    $region35: #{tpu_custom_call.1} parent=1 // pred_check_branch
      %34 = sbr.rel (0) target = $region37
    $region36: #{tpu_custom_call.1} parent=1 // pred_region
      _
    $region37: #{tpu_custom_call.1} parent=1 // pred_fallthru
      _
    %v35 = vld [vmem:[%s0] sm:$0x3]
    %v36 = vld [vmem:[%s1] sm:$0xff]
    %v37 = vld [vmem:[%s1 + $0x8] sm:$0xff]
    %v38 = vld [vmem:[%s2] sm:$0xff]
    %v39 = vld [vmem:[%s2 + $0x8] sm:$0xff]
    %41 = vset.pattern.permute.xlu0 0
    %42 = vperm.xlu0 %41, %v38
    %v43 = vpop.permute.xlu0 %42
    %46 = vset.pattern.permute.xlu0 0
    %47 = vperm.xlu0 %46, %v39
    %v48 = vpop.permute.xlu0 %47
    %vm50 = vcmask 15360
    %v52 = vsel %vm50, %v36, 0
    %v55 = vsel %vm50, %v37, 0
    %vm57 = vcmask 1041408
    %v59 = vsel %vm57, %v35, 0
    %61 = vmatprep.subr.mxu0 0.0
    %62 = vmatpush1.msra.mxu0 %v59
    %63 = vmatprep.subr.mxu0 0.0
    %64 = vmatpush1.msra.mxu0 0.0
    %65 = vmatprep.subr.mxu0 0.0
    %66 = vmatpush1.msra.mxu0 0.0
    %67 = vmatprep.subr.mxu0 0.0
    %68 = vmatpush1.msra.mxu0 0.0
    %69 = vmatprep.subr.mxu0 0.0
    %70 = vmatpush1.msra.mxu0 0.0
    %71 = vmatprep.subr.mxu0 0.0
    %72 = vmatpush1.msra.mxu0 0.0
    %73 = vmatprep.subr.mxu0 0.0
    %74 = vmatpush1.msra.mxu0 0.0
    %75 = vmatprep.subr.mxu0 0.0
    %76 = vmatpush1.msra.mxu0 0.0
    %77 = vmatprep.subr.mxu0 0.0
    %78 = vmatpush1.msra.mxu0 0.0
    %79 = vmatprep.subr.mxu0 0.0
    %80 = vmatpush1.msra.mxu0 0.0
    %81 = vmatprep.subr.mxu0 0.0
    %82 = vmatpush1.msra.mxu0 0.0
    %83 = vmatprep.subr.mxu0 0.0
    %84 = vmatpush1.msra.mxu0 0.0
    %85 = vmatprep.subr.mxu0 0.0
    %86 = vmatpush1.msra.mxu0 0.0
    %87 = vmatprep.subr.mxu0 0.0
    %88 = vmatpush1.msra.mxu0 0.0
    %89 = vmatprep.subr.mxu0 0.0
    %90 = vmatpush1.msra.mxu0 0.0
    %91 = vmatprep.subr.mxu0 0.0
    %92 = vmatpush1.msra.mxu0 0.0
    %93 = vmatprep.subr.mxu0 0.0
    %94 = vmatpush1.msra.mxu0 0.0
    %95 = vmatprep.subr.mxu0 0.0
    %96 = vmatpush1.msra.mxu0 0.0
    %97 = vmatprep.subr.mxu0 0.0
    %98 = vmatpush1.msra.mxu0 0.0
    %99 = vmatprep.subr.mxu0 0.0
    %100 = vmatpush1.msra.mxu0 0.0
    %101 = vmatprep.subr.mxu0 0.0
    %102 = vmatpush1.msra.mxu0 0.0
    %103 = vmatprep.subr.mxu0 0.0
    %104 = vmatpush1.msra.mxu0 0.0
    %105 = vmatprep.subr.mxu0 0.0
    %106 = vmatpush1.msra.mxu0 0.0
    %107 = vmatprep.subr.mxu0 0.0
    %108 = vmatpush1.msra.mxu0 0.0
    %109 = vmatprep.subr.mxu0 0.0
    %110 = vmatpush1.msra.mxu0 0.0
    %111 = vmatprep.subr.mxu0 0.0
    %112 = vmatpush1.msra.mxu0 0.0
    %113 = vmatprep.subr.mxu0 0.0
    %114 = vmatpush1.msra.mxu0 0.0
    %115 = vmatprep.subr.mxu0 0.0
    %116 = vmatpush1.msra.mxu0 0.0
    %117 = vmatprep.subr.mxu0 0.0
    %118 = vmatpush1.msra.mxu0 0.0
    %119 = vmatprep.subr.mxu0 0.0
    %120 = vmatpush1.msra.mxu0 0.0
    %121 = vmatprep.subr.mxu0 0.0
    %122 = vmatpush1.msra.mxu0 0.0
    %123 = vmatprep.subr.mxu0 0.0
    %124 = vmatpush1.msra.mxu0 0.0
    %125 = vmatprep.mubr.f32.mxu0 0.0
    %126 = vmatmul.mubr.f32.gmra.mrb[0].mxu0 %v52
    %v127 = vpop.f32.mrb[0].mxu0
    %v128 = vadd.f32 %v43, %v127
    %v129 = vpop.f32.mrb[0].mxu0
    %130 = vmatprep.mubr.f32.mxu0 0.0
    %131 = vmatmul.mubr.f32.gmra.mrb[0].mxu0 %v55
    %v132 = vpop.f32.mrb[0].mxu0
    %v133 = vadd.f32 %v48, %v132
    %v134 = vpop.f32.mrb[0].mxu0
    %135 = vdwg.mxu0
    %v136 = vmax.f32 %v128, 0.0
    %v137 = vmax.f32 %v133, 0.0
    %v138 = vld [vmem:[%s3] sm:$0xff]
    %v139 = vld [vmem:[%s3 + $0x8] sm:$0xff]
    %v140 = vld [vmem:[%s4] sm:$0xff]
    %v141 = vld [vmem:[%s4 + $0x8] sm:$0xff]
    %143 = vset.pattern.permute.xlu0 0
    %144 = vperm.xlu0 %143, %v140
    %v145 = vpop.permute.xlu0 %144
    %148 = vset.pattern.permute.xlu0 0
    %149 = vperm.xlu0 %148, %v141
    %v150 = vpop.permute.xlu0 %149
    %vm152 = vcmask 130048
    %v154 = vsel %vm152, %v138, 0
    %v157 = vsel %vm152, %v139, 0
    %159 = vmatprep.subr.mxu0 0.0
    %160 = vmatpush1.msra.mxu0 %v136
    %161 = vmatprep.subr.mxu0 0.0
    %162 = vmatpush1.msra.mxu0 %v137
    %163 = vmatprep.subr.mxu0 0.0
    %164 = vmatpush1.msra.mxu0 0.0
    %165 = vmatprep.subr.mxu0 0.0
    %166 = vmatpush1.msra.mxu0 0.0
    %167 = vmatprep.subr.mxu0 0.0
    %168 = vmatpush1.msra.mxu0 0.0
    %169 = vmatprep.subr.mxu0 0.0
    %170 = vmatpush1.msra.mxu0 0.0
    %171 = vmatprep.subr.mxu0 0.0
    %172 = vmatpush1.msra.mxu0 0.0
    %173 = vmatprep.subr.mxu0 0.0
    %174 = vmatpush1.msra.mxu0 0.0
    %175 = vmatprep.subr.mxu0 0.0
    %176 = vmatpush1.msra.mxu0 0.0
    %177 = vmatprep.subr.mxu0 0.0
    %178 = vmatpush1.msra.mxu0 0.0
    %179 = vmatprep.subr.mxu0 0.0
    %180 = vmatpush1.msra.mxu0 0.0
    %181 = vmatprep.subr.mxu0 0.0
    %182 = vmatpush1.msra.mxu0 0.0
    %183 = vmatprep.subr.mxu0 0.0
    %184 = vmatpush1.msra.mxu0 0.0
    %185 = vmatprep.subr.mxu0 0.0
    %186 = vmatpush1.msra.mxu0 0.0
    %187 = vmatprep.subr.mxu0 0.0
    %188 = vmatpush1.msra.mxu0 0.0
    %189 = vmatprep.subr.mxu0 0.0
    %190 = vmatpush1.msra.mxu0 0.0
    %191 = vmatprep.subr.mxu0 0.0
    %192 = vmatpush1.msra.mxu0 0.0
    %193 = vmatprep.subr.mxu0 0.0
    %194 = vmatpush1.msra.mxu0 0.0
    %195 = vmatprep.subr.mxu0 0.0
    %196 = vmatpush1.msra.mxu0 0.0
    %197 = vmatprep.subr.mxu0 0.0
    %198 = vmatpush1.msra.mxu0 0.0
    %199 = vmatprep.subr.mxu0 0.0
    %200 = vmatpush1.msra.mxu0 0.0
    %201 = vmatprep.subr.mxu0 0.0
    %202 = vmatpush1.msra.mxu0 0.0
    %203 = vmatprep.subr.mxu0 0.0
    %204 = vmatpush1.msra.mxu0 0.0
    %205 = vmatprep.subr.mxu0 0.0
    %206 = vmatpush1.msra.mxu0 0.0
    %207 = vmatprep.subr.mxu0 0.0
    %208 = vmatpush1.msra.mxu0 0.0
    %209 = vmatprep.subr.mxu0 0.0
    %210 = vmatpush1.msra.mxu0 0.0
    %211 = vmatprep.subr.mxu0 0.0
    %212 = vmatpush1.msra.mxu0 0.0
    %213 = vmatprep.subr.mxu0 0.0
    %214 = vmatpush1.msra.mxu0 0.0
    %215 = vmatprep.subr.mxu0 0.0
    %216 = vmatpush1.msra.mxu0 0.0
    %217 = vmatprep.subr.mxu0 0.0
    %218 = vmatpush1.msra.mxu0 0.0
    %219 = vmatprep.subr.mxu0 0.0
    %220 = vmatpush1.msra.mxu0 0.0
    %221 = vmatprep.subr.mxu0 0.0
    %222 = vmatpush1.msra.mxu0 0.0
    %223 = vmatprep.mubr.f32.mxu0 0.0
    %224 = vmatmul.mubr.f32.gmra.mrb[0].mxu0 %v154
    %v225 = vpop.f32.mrb[0].mxu0
    %v226 = vadd.f32 %v145, %v225
    %v227 = vpop.f32.mrb[0].mxu0
    %228 = vmatprep.mubr.f32.mxu0 0.0
    %229 = vmatmul.mubr.f32.gmra.mrb[0].mxu0 %v157
    %v230 = vpop.f32.mrb[0].mxu0
    %v231 = vadd.f32 %v150, %v230
    %v232 = vpop.f32.mrb[0].mxu0
    %233 = vdwg.mxu0
    %v234 = vmax.f32 %v226, 0.0
    %v235 = vmax.f32 %v231, 0.0
    %v236 = vld [vmem:[%s5] sm:$0xff]
    %v237 = vld [vmem:[%s5 + $0x8] sm:$0xff]
    %v238 = vld [vmem:[%s6] sm:$0xff]
    %v239 = vld [vmem:[%s6 + $0x8] sm:$0xff]
    %241 = vset.pattern.permute.xlu0 0
    %242 = vperm.xlu0 %241, %v238
    %v243 = vpop.permute.xlu0 %242
    %246 = vset.pattern.permute.xlu0 0
    %247 = vperm.xlu0 %246, %v239
    %v248 = vpop.permute.xlu0 %247
    %v251 = vsel %vm152, %v236, 0
    %v254 = vsel %vm152, %v237, 0
    %256 = vmatprep.subr.mxu0 0.0
    %257 = vmatpush1.msra.mxu0 %v234
    %258 = vmatprep.subr.mxu0 0.0
    %259 = vmatpush1.msra.mxu0 %v235
    %260 = vmatprep.subr.mxu0 0.0
    %261 = vmatpush1.msra.mxu0 0.0
    %262 = vmatprep.subr.mxu0 0.0
    %263 = vmatpush1.msra.mxu0 0.0
    %264 = vmatprep.subr.mxu0 0.0
    %265 = vmatpush1.msra.mxu0 0.0
    %266 = vmatprep.subr.mxu0 0.0
    %267 = vmatpush1.msra.mxu0 0.0
    %268 = vmatprep.subr.mxu0 0.0
    %269 = vmatpush1.msra.mxu0 0.0
    %270 = vmatprep.subr.mxu0 0.0
    %271 = vmatpush1.msra.mxu0 0.0
    %272 = vmatprep.subr.mxu0 0.0
    %273 = vmatpush1.msra.mxu0 0.0
    %274 = vmatprep.subr.mxu0 0.0
    %275 = vmatpush1.msra.mxu0 0.0
    %276 = vmatprep.subr.mxu0 0.0
    %277 = vmatpush1.msra.mxu0 0.0
    %278 = vmatprep.subr.mxu0 0.0
    %279 = vmatpush1.msra.mxu0 0.0
    %280 = vmatprep.subr.mxu0 0.0
    %281 = vmatpush1.msra.mxu0 0.0
    %282 = vmatprep.subr.mxu0 0.0
    %283 = vmatpush1.msra.mxu0 0.0
    %284 = vmatprep.subr.mxu0 0.0
    %285 = vmatpush1.msra.mxu0 0.0
    %286 = vmatprep.subr.mxu0 0.0
    %287 = vmatpush1.msra.mxu0 0.0
    %288 = vmatprep.subr.mxu0 0.0
    %289 = vmatpush1.msra.mxu0 0.0
    %290 = vmatprep.subr.mxu0 0.0
    %291 = vmatpush1.msra.mxu0 0.0
    %292 = vmatprep.subr.mxu0 0.0
    %293 = vmatpush1.msra.mxu0 0.0
    %294 = vmatprep.subr.mxu0 0.0
    %295 = vmatpush1.msra.mxu0 0.0
    %296 = vmatprep.subr.mxu0 0.0
    %297 = vmatpush1.msra.mxu0 0.0
    %298 = vmatprep.subr.mxu0 0.0
    %299 = vmatpush1.msra.mxu0 0.0
    %300 = vmatprep.subr.mxu0 0.0
    %301 = vmatpush1.msra.mxu0 0.0
    %302 = vmatprep.subr.mxu0 0.0
    %303 = vmatpush1.msra.mxu0 0.0
    %304 = vmatprep.subr.mxu0 0.0
    %305 = vmatpush1.msra.mxu0 0.0
    %306 = vmatprep.subr.mxu0 0.0
    %307 = vmatpush1.msra.mxu0 0.0
    %308 = vmatprep.subr.mxu0 0.0
    %309 = vmatpush1.msra.mxu0 0.0
    %310 = vmatprep.subr.mxu0 0.0
    %311 = vmatpush1.msra.mxu0 0.0
    %312 = vmatprep.subr.mxu0 0.0
    %313 = vmatpush1.msra.mxu0 0.0
    %314 = vmatprep.subr.mxu0 0.0
    %315 = vmatpush1.msra.mxu0 0.0
    %316 = vmatprep.subr.mxu0 0.0
    %317 = vmatpush1.msra.mxu0 0.0
    %318 = vmatprep.subr.mxu0 0.0
    %319 = vmatpush1.msra.mxu0 0.0
    %320 = vmatprep.mubr.f32.mxu0 0.0
    %321 = vmatmul.mubr.f32.gmra.mrb[0].mxu0 %v251
    %v322 = vpop.f32.mrb[0].mxu0
    %v323 = vadd.f32 %v243, %v322
    %v324 = vpop.f32.mrb[0].mxu0
    %325 = vmatprep.mubr.f32.mxu0 0.0
    %326 = vmatmul.mubr.f32.gmra.mrb[0].mxu0 %v254
    %v327 = vpop.f32.mrb[0].mxu0
    %v328 = vadd.f32 %v248, %v327
    %v329 = vpop.f32.mrb[0].mxu0
    %330 = vdwg.mxu0
    %v331 = vmax.f32 %v323, 0.0
    %v332 = vmax.f32 %v328, 0.0
    %v333 = vld [vmem:[%s7] sm:$0x1]
    %v334 = vld [vmem:[#allocation2] sm:$0x1]
    %336 = vset.pattern.permute.xlu0 0
    %337 = vperm.xlu0 %336, %v334
    %v338 = vpop.permute.xlu0 %337
    %v340 = vlaneseq
    %v341 = vshrl.u32 %v340, 7
    %v342 = vsub.s32 0, %v341
    %v343 = vrot.slane %v338, %v342
    %v345 = vsel %vm152, %v333, 0
    %347 = vmatprep.subr.mxu0 0.0
    %348 = vmatpush1.msra.mxu0 %v331
    %349 = vmatprep.subr.mxu0 0.0
    %350 = vmatpush1.msra.mxu0 %v332
    %351 = vmatprep.subr.mxu0 0.0
    %352 = vmatpush1.msra.mxu0 0.0
    %353 = vmatprep.subr.mxu0 0.0
    %354 = vmatpush1.msra.mxu0 0.0
    %355 = vmatprep.subr.mxu0 0.0
    %356 = vmatpush1.msra.mxu0 0.0
    %357 = vmatprep.subr.mxu0 0.0
    %358 = vmatpush1.msra.mxu0 0.0
    %359 = vmatprep.subr.mxu0 0.0
    %360 = vmatpush1.msra.mxu0 0.0
    %361 = vmatprep.subr.mxu0 0.0
    %362 = vmatpush1.msra.mxu0 0.0
    %363 = vmatprep.subr.mxu0 0.0
    %364 = vmatpush1.msra.mxu0 0.0
    %365 = vmatprep.subr.mxu0 0.0
    %366 = vmatpush1.msra.mxu0 0.0
    %367 = vmatprep.subr.mxu0 0.0
    %368 = vmatpush1.msra.mxu0 0.0
    %369 = vmatprep.subr.mxu0 0.0
    %370 = vmatpush1.msra.mxu0 0.0
    %371 = vmatprep.subr.mxu0 0.0
    %372 = vmatpush1.msra.mxu0 0.0
    %373 = vmatprep.subr.mxu0 0.0
    %374 = vmatpush1.msra.mxu0 0.0
    %375 = vmatprep.subr.mxu0 0.0
    %376 = vmatpush1.msra.mxu0 0.0
    %377 = vmatprep.subr.mxu0 0.0
    %378 = vmatpush1.msra.mxu0 0.0
    %379 = vmatprep.subr.mxu0 0.0
    %380 = vmatpush1.msra.mxu0 0.0
    %381 = vmatprep.subr.mxu0 0.0
    %382 = vmatpush1.msra.mxu0 0.0
    %383 = vmatprep.subr.mxu0 0.0
    %384 = vmatpush1.msra.mxu0 0.0
    %385 = vmatprep.subr.mxu0 0.0
    %386 = vmatpush1.msra.mxu0 0.0
    %387 = vmatprep.subr.mxu0 0.0
    %388 = vmatpush1.msra.mxu0 0.0
    %389 = vmatprep.subr.mxu0 0.0
    %390 = vmatpush1.msra.mxu0 0.0
    %391 = vmatprep.subr.mxu0 0.0
    %392 = vmatpush1.msra.mxu0 0.0
    %393 = vmatprep.subr.mxu0 0.0
    %394 = vmatpush1.msra.mxu0 0.0
    %395 = vmatprep.subr.mxu0 0.0
    %396 = vmatpush1.msra.mxu0 0.0
    %397 = vmatprep.subr.mxu0 0.0
    %398 = vmatpush1.msra.mxu0 0.0
    %399 = vmatprep.subr.mxu0 0.0
    %400 = vmatpush1.msra.mxu0 0.0
    %401 = vmatprep.subr.mxu0 0.0
    %402 = vmatpush1.msra.mxu0 0.0
    %403 = vmatprep.subr.mxu0 0.0
    %404 = vmatpush1.msra.mxu0 0.0
    %405 = vmatprep.subr.mxu0 0.0
    %406 = vmatpush1.msra.mxu0 0.0
    %407 = vmatprep.subr.mxu0 0.0
    %408 = vmatpush1.msra.mxu0 0.0
    %409 = vmatprep.subr.mxu0 0.0
    %410 = vmatpush1.msra.mxu0 0.0
    %411 = vmatprep.mubr.f32.mxu0 0.0
    %412 = vmatmul.mubr.f32.gmra.mrb[0].mxu0 %v345
    %v413 = vpop.f32.mrb[0].mxu0
    %v414 = vadd.f32 %v343, %v413
    %v415 = vpop.f32.mrb[0].mxu0
    %416 = vdwg.mxu0
    %v417 = vxor.u32 %v414, 2147483648
    %v418 = vmul.f32 %v417, 1.442695
    %v419 = vpow.pop %v418
    %v420 = vadd.f32 %v419, 1.0
    %v421 = vrcp.pop %v420
    %v422 = vmul.f32 1.0, %v421
    %423 = vst [vmem:[#allocation3] sm:$0x1] %v422
    // Predicated region
    $region38: #{tpu_custom_call.1} parent=1 // pred_check
      _
    $region39: #{tpu_custom_call.1} parent=1 // pred_check_branch
      %425 = sbr.rel (0) target = $region41
    $region40: #{tpu_custom_call.1} parent=1 // pred_region
      %s427 = ssub.s32 16, 16
      %428 = vsyncadd [#allocation4], %s427
      %s430 = sshll.u32 [#allocation3], 4
      %s431 = int_to_ptr.vmem [resolvable:$true] %s430
      %433 = dma.vmem_to_hbm [thread:$0]  %s431, 16, %s9, [#allocation4]
    $region41: #{tpu_custom_call.1} parent=1 // pred_fallthru
      _
    // Predicated region
    $region42: #{tpu_custom_call.1} parent=1 // pred_check
      _
    $region43: #{tpu_custom_call.1} parent=1 // pred_check_branch
      %435 = sbr.rel (0) target = $region45
    $region44: #{tpu_custom_call.1} parent=1 // pred_region
      %436 = dma.done [#allocation4], 16
    $region45: #{tpu_custom_call.1} parent=1 // pred_fallthru
      _
    %437 = vsyncpa [#allocation4], 1

</llo_original>
